<compile_context>
chip_gen: v5e
topology: v5e:2x2
jax: 0.10.0
libtpu: 0.0.40
codegen_flags: <defaults>
</compile_context>

<pallas_src>
import math

import jax
import jax.numpy as jnp
from jax.experimental import pallas as pl
from jax.experimental.pallas import tpu as pltpu

# ---- model hyperparameters (from the PyTorch module) -----------------------
BLOCK_SIZE = 8      # T
N_EMB = 32
VOCAB_SIZE = 65

LANE = 128          # TPU lane width (last-dim vreg width)
MAX_TILE_ROWS = 256 # rows per grid step (VMEM per step stays tiny)


def _round_up(x, m):
    return ((x + m - 1) // m) * m


def _bigram_kernel(idx_ref, tok_ref, pos_ref, out_ref):
    """Fused forward on a row-chunk.

    idx_ref: (rows, 1)      int32   flattened token ids (row-major over B, T)
    tok_ref: (V,   Vp)      float32 fused table  = tok_table @ W + b   (lane-padded)
    pos_ref: (T,   Vp)      float32 fused table  = pos_table @ W       (lane-padded)
    out_ref: (rows, Vp)     float32 logits (lane-padded)
    """
    rows = idx_ref.shape[0]
    vocab = tok_ref.shape[0]
    t = pos_ref.shape[0]

    idx = idx_ref[...]                                              # (rows, 1)

    # Token-row gather as one-hot @ fused table (single MXU matmul).
    vocab_iota = jax.lax.broadcasted_iota(jnp.int32, (rows, vocab), 1)
    onehot = (vocab_iota == idx).astype(jnp.float32)                # (rows, V)
    logits = jnp.dot(onehot, tok_ref[...],
                     preferred_element_type=jnp.float32)            # (rows, Vp)

    # Positional contribution: rows are (rows // T) contiguous sequences of
    # length T, and each row-chunk starts at a multiple of T, so a simple
    # sublane tile of the (T, Vp) table lines up with every row (pure VPU add).
    logits = logits + jnp.tile(pos_ref[...], (rows // t, 1))

    out_ref[...] = logits                                           # full-lane vst


def bigram_forward(idx, tok_table, pos_table, w_head, b_head):
    """idx: (B, T) int32 -> logits (B, T, vocab) float32 (target=None path)."""
    B, T = idx.shape
    V, E = tok_table.shape
    assert T == BLOCK_SIZE and pos_table.shape == (T, E)
    assert w_head.shape == (E, V) and b_head.shape[-1] == V

    # ---- head fold (weights-only precompute; amortized across calls) -------
    fused_tok = tok_table @ w_head + b_head.reshape(1, V)   # (V, V)
    fused_pos = pos_table @ w_head                          # (T, V)

    # ---- lane-pad to 128 for unmasked stores / full vregs ------------------
    v_pad = _round_up(V, LANE)
    fused_tok = jnp.pad(fused_tok, ((0, 0), (0, v_pad - V)))
    fused_pos = jnp.pad(fused_pos, ((0, 0), (0, v_pad - V)))

    # ---- row tiling: multiple of T (pos tiling) and 8 (sublane) ------------
    BT = B * T
    row_mult = math.lcm(T, 8)
    max_tile = max(row_mult, (MAX_TILE_ROWS // row_mult) * row_mult)
    tile_rows = min(_round_up(BT, row_mult), max_tile)
    bt_pad = _round_up(BT, tile_rows)
    grid = (bt_pad // tile_rows,)

    idx_flat = idx.reshape(BT).astype(jnp.int32)
    idx_flat = jnp.pad(idx_flat, (0, bt_pad - BT))           # pad rows w/ token 0
    idx_flat = idx_flat.reshape(bt_pad, 1)

    out = pl.pallas_call(
        _bigram_kernel,
        out_shape=jax.ShapeDtypeStruct((bt_pad, v_pad), jnp.float32),
        grid_spec=pltpu.PrefetchScalarGridSpec(
            num_scalar_prefetch=0,
            grid=grid,
            in_specs=[
                pl.BlockSpec((tile_rows, 1), lambda i: (i, 0)),   # idx rows
                pl.BlockSpec((V, v_pad), lambda i: (0, 0)),       # fused tok table
                pl.BlockSpec((T, v_pad), lambda i: (0, 0)),       # fused pos table
            ],
            out_specs=pl.BlockSpec((tile_rows, v_pad), lambda i: (i, 0)),
        ),
        compiler_params=pltpu.CompilerParams(
            dimension_semantics=("parallel",)),                   # v7x: 2 TCs
    )(idx_flat, fused_tok, fused_pos)

    return out[:BT, :V].reshape(B, T, V)


def init_params(key):
    """Deterministic parameter init mirroring the module's layer shapes."""
    k1, k2, k3, k4 = jax.random.split(key, 4)
    tok_table = jax.random.normal(k1, (VOCAB_SIZE, N_EMB), jnp.float32)
    pos_table = jax.random.normal(k2, (BLOCK_SIZE, N_EMB), jnp.float32)
    # nn.Linear(n_emb, vocab): uniform(-1/sqrt(fan_in), 1/sqrt(fan_in))
    bound = 1.0 / (N_EMB ** 0.5)
    w_head = jax.random.uniform(k3, (N_EMB, VOCAB_SIZE), jnp.float32,
                                minval=-bound, maxval=bound)
    b_head = jax.random.uniform(k4, (1, VOCAB_SIZE), jnp.float32,
                                minval=-bound, maxval=bound)
    return tok_table, pos_table, w_head, b_head


if __name__ == "__main__":
    key = jax.random.PRNGKey(0)
    pkey, ikey = jax.random.split(key)
    tok_table, pos_table, w_head, b_head = init_params(pkey)

    B, T = 2, BLOCK_SIZE
    idx = jax.random.randint(ikey, (B, T), 0, VOCAB_SIZE, dtype=jnp.int32)

    logits = bigram_forward(idx, tok_table, pos_table, w_head, b_head)
    logits = jax.block_until_ready(logits)

    # Pure-JAX reference (embedding gather + positional add + linear head).
    # The head-folded kernel reassociates the f32 adds/matmuls, so use a
    # slightly looser tolerance than exact-order bit matching would allow.
    ref = (tok_table[idx] + pos_table[jnp.arange(T)][None, :, :]) @ w_head \
          + b_head[0]
    assert logits.shape == (B, T, VOCAB_SIZE)
    assert jnp.allclose(logits, ref, atol=1e-4, rtol=1e-4)

    print("KERNEL_OK")
</pallas_src>

<mosaic_0001>
module attributes {stable_mosaic.version = 11 : i64} {
  func.func @_bigram_kernel(%arg0: i32, %arg1: memref<16x1xi32, #tpu.memory_space<vmem>>, %arg2: memref<65x128xf32, #tpu.memory_space<vmem>>, %arg3: memref<8x128xf32, #tpu.memory_space<vmem>>, %arg4: memref<16x128xf32, #tpu.memory_space<vmem>>) attributes {dimension_semantics = [#tpu.dimension_semantics<parallel>], iteration_bounds = array<i64: 1>, scalar_prefetch = 0 : i64, scratch_operands = 0 : i64, tpu.core_type = #tpu.core_type<tc>, window_params = [{transform_indices = @transform_0, window_bounds = array<i64: 16, 1>}, {pipeline_mode = #tpu.pipeline_mode<synchronous>, transform_indices = @transform_1, window_bounds = array<i64: 65, 128>}, {pipeline_mode = #tpu.pipeline_mode<synchronous>, transform_indices = @transform_2, window_bounds = array<i64: 8, 128>}, {transform_indices = @transform_3, window_bounds = array<i64: 16, 128>}]} {
    %c0 = arith.constant 0 : index
    %c0_0 = arith.constant 0 : index
    %0 = vector.load %arg1[%c0, %c0_0] : memref<16x1xi32, #tpu.memory_space<vmem>>, vector<16x1xi32>
    %1 = tpu.iota {dimensions = array<i32: 1>} : vector<16x65xi32>
    %2 = vector.broadcast %0 : vector<16x1xi32> to vector<16x65xi32>
    %3 = arith.cmpi eq, %1, %2 : vector<16x65xi32>
    %4 = arith.extui %3 : vector<16x65xi1> to vector<16x65xi32>
    %5 = arith.sitofp %4 : vector<16x65xi32> to vector<16x65xf32>
    %c0_1 = arith.constant 0 : index
    %c0_2 = arith.constant 0 : index
    %6 = vector.load %arg2[%c0_1, %c0_2] : memref<65x128xf32, #tpu.memory_space<vmem>>, vector<65x128xf32>
    %cst = arith.constant dense<0.000000e+00> : vector<16x128xf32>
    %7 = tpu.matmul %5, %6, %cst {dimension_numbers = #tpu.dot_dimension_numbers<[1], [0], [0], [1], [0, 0, 1, 1], [], []>} : vector<16x65xf32>, vector<65x128xf32>, vector<16x128xf32> -> vector<16x128xf32>
    %c0_3 = arith.constant 0 : index
    %c0_4 = arith.constant 0 : index
    %8 = vector.load %arg3[%c0_3, %c0_4] : memref<8x128xf32, #tpu.memory_space<vmem>>, vector<8x128xf32>
    %9 = tpu.concatenate %8, %8 in 0 : vector<8x128xf32>, vector<8x128xf32> -> vector<16x128xf32>
    %10 = arith.addf %7, %9 : vector<16x128xf32>
    %c0_5 = arith.constant 0 : index
    %c0_6 = arith.constant 0 : index
    %11 = vector.load %arg4[%c0_5, %c0_6] : memref<16x128xf32, #tpu.memory_space<vmem>>, vector<16x128xf32>
    tpu.vector_store %arg4[%c0_5, %c0_6], %10 {strides = array<i32>} : memref<16x128xf32, #tpu.memory_space<vmem>>, vector<16x128xf32>,
    return
  }
  func.func @transform_0(%arg0: i32) -> (i32, i32) {
    %c0_i32 = arith.constant 0 : i32
    %c0_i32_0 = arith.constant 0 : i32
    return %arg0, %c0_i32 : i32, i32
  }
  func.func @transform_1(%arg0: i32) -> (i32, i32) {
    %c0_i32 = arith.constant 0 : i32
    %c0_i32_0 = arith.constant 0 : i32
    %c0_i32_1 = arith.constant 0 : i32
    return %c0_i32, %c0_i32_0 : i32, i32
  }
  func.func @transform_2(%arg0: i32) -> (i32, i32) {
    %c0_i32 = arith.constant 0 : i32
    %c0_i32_0 = arith.constant 0 : i32
    %c0_i32_1 = arith.constant 0 : i32
    return %c0_i32, %c0_i32_0 : i32, i32
  }
  func.func @transform_3(%arg0: i32) -> (i32, i32) {
    %c0_i32 = arith.constant 0 : i32
    %c0_i32_0 = arith.constant 0 : i32
    return %arg0, %c0_i32 : i32, i32
  }
}

</mosaic_0001>

<llo_original>
// kernel: tpu_custom_call.1
$region0: #{tpu_custom_call.1}
  #allocation0 [shape = 'u32[]', space=smem, size = 0x4, offset = 0x4, fixed_abs, tag = 'smem constant byte address 0x4 - core index']
  #allocation1 [shape = 'u32[72,128]{1,0:T(1,128)}', space=vmem, size = 0x9000, scoped, tag = 'internal scratch']
  %s0 = inlined_call_operand.vmem [shape: s32[16,1], index: 0, kind: input, shape index: {}]
  %s1 = inlined_call_operand.hbm [shape: f32[65,128], index: 1, kind: input, shape index: {}]
  %s2 = inlined_call_operand.vmem [shape: f32[8,128], index: 2, kind: input, shape index: {}]
  %s3 = inlined_call_operand.hbm [shape: f32[16,128], index: 3, kind: output, shape index: {}]
  %s4 = sld [smem:[#allocation0]]
  $region26: #{tpu_custom_call.1} parent=0
    _
  %s6 = ssub.s32 1, %s4
  %s7 = scalar_select 0, %s6, %s4
  $region1: #{tpu_custom_call.1} parent=0
    #allocation2 [shape = 'u8[36864]{0}', space=vmem, size = 0x9000, scoped, tag = 'input window, operand 1, single buffered']
    #allocation3 [shape = 's32[1]{0}', space=sflag, size = 0x4, scoped, tag = 'scoped memory for tpu_custom_call.1']
    #allocation4 [shape = 's32[1]{0}', space=sflag, size = 0x4, scoped, tag = 'scoped memory for tpu_custom_call.1']
    #allocation5 [shape = 'u8[8192]{0}', space=vmem, size = 0x2000, scoped, tag = 'output window, operand 0, single buffered']
    %8 = vsyncpa [#allocation3], 0
    %9 = vsyncpa [#allocation4], 0
    // Predicated region
    $region2: #{tpu_custom_call.1} parent=1 // pred_check
      _
    $region3: #{tpu_custom_call.1} parent=1 // pred_check_branch
      %11 = sbr.rel (0) target = $region5
    $region4: #{tpu_custom_call.1} parent=1 // pred_region
      _
    $region5: #{tpu_custom_call.1} parent=1 // pred_fallthru
      _
    // Predicated region
    $region6: #{tpu_custom_call.1} parent=1 // pred_check
      _
    $region7: #{tpu_custom_call.1} parent=1 // pred_check_branch
      %13 = sbr.rel (0) target = $region9
    $region8: #{tpu_custom_call.1} parent=1 // pred_region
      %15 = vsyncadd [#allocation3], 0
      %s16 = sshll.u32 %s1, 4
      %s17 = int_to_ptr.hbm [resolvable:$true] %s16
      %s18 = sshll.u32 [#allocation2], 4
      %s19 = int_to_ptr.vmem [resolvable:$true] %s18
      %24 = dma.hbm_to_vmem [thread:$0]  %s17, 1152, %s19, [#allocation3], 128, 128, 8
    $region9: #{tpu_custom_call.1} parent=1 // pred_fallthru
      _
    // Predicated region
    $region10: #{tpu_custom_call.1} parent=1 // pred_check
      _
    $region11: #{tpu_custom_call.1} parent=1 // pred_check_branch
      %26 = sbr.rel (0) target = $region13
    $region12: #{tpu_custom_call.1} parent=1 // pred_region
      _
    $region13: #{tpu_custom_call.1} parent=1 // pred_fallthru
      _
    // Predicated region
    $region14: #{tpu_custom_call.1} parent=1 // pred_check
      _
    $region15: #{tpu_custom_call.1} parent=1 // pred_check_branch
      %28 = sbr.rel (0) target = $region17
    $region16: #{tpu_custom_call.1} parent=1 // pred_region
      %30 = dma.done [#allocation3], 1152
    $region17: #{tpu_custom_call.1} parent=1 // pred_fallthru
      _
    %v31 = vld [vmem:[%s0] sm:$0xff]
    %v32 = vld [vmem:[%s0 + $0x8] sm:$0xff]
    %v33 = vlaneseq
    %v34 = vand.u32 %v33, 127
    %35 = vset.pattern.permute.xlu0 0
    %36 = vperm.xlu0 %35, %v31
    %v37 = vpop.permute.xlu0 %36
    %38 = vset.pattern.permute.xlu0 0
    %39 = vperm.xlu0 %38, %v32
    %v40 = vpop.permute.xlu0 %39
    %vm41 = vcmp.eq.s32.totalorder %v34, %v37
    %vm42 = vcmp.eq.s32.totalorder %v34, %v40
    %v43 = vsel %vm41, 1, 0
    %v44 = vsel %vm42, 1, 0
    %v45 = vcvt.s32.f32 %v43
    %v46 = vcvt.s32.f32 %v44
    %v47 = vld [vmem:[#allocation2] sm:$0xff]
    %v48 = vld [vmem:[#allocation2 + $0x8] sm:$0xff]
    %v49 = vld [vmem:[#allocation2 + $0x10] sm:$0xff]
    %v50 = vld [vmem:[#allocation2 + $0x18] sm:$0xff]
    %v51 = vld [vmem:[#allocation2 + $0x20] sm:$0xff]
    %v52 = vld [vmem:[#allocation2 + $0x28] sm:$0xff]
    %v53 = vld [vmem:[#allocation2 + $0x30] sm:$0xff]
    %v54 = vld [vmem:[#allocation2 + $0x38] sm:$0xff]
    %v55 = vld [vmem:[#allocation2 + $0x40] sm:$0x1]
    %v56 = vld [vmem:[%s2] sm:$0xff]
    %vm57 = vcmask 531456
    %v59 = vsel %vm57, %v45, 0
    %v62 = vsel %vm57, %v46, 0
    %vm64 = vcmask 1040384
    %v66 = vsel %vm64, %v55, 0
    %68 = vmatpush.msra.mxu0 0.0
    %69 = vmatpush.msra.mxu0 0.0
    %70 = vmatpush.msra.mxu0 0.0
    %71 = vmatpush.msra.mxu0 0.0
    %72 = vmatpush.msra.mxu0 0.0
    %73 = vmatpush.msra.mxu0 0.0
    %74 = vmatpush.msra.mxu0 0.0
    %75 = vmatpush.msra.mxu0 %v66
    %76 = vmatpush.msra.mxu0 %v54
    %77 = vmatpush.msra.mxu0 %v53
    %78 = vmatpush.msra.mxu0 %v52
    %79 = vmatpush.msra.mxu0 %v51
    %80 = vmatpush.msra.mxu0 %v50
    %81 = vmatpush.msra.mxu0 %v49
    %82 = vmatpush.msra.mxu0 %v48
    %83 = vmatpush.msra.mxu0 %v47
    %84 = vmatmul.f32.gmra.mxu0 %v59
    %v85 = vpop.f32.mrf.mxu0
    %v86 = vadd.f32 %v56, %v85
    %87 = vmatmul.f32.gmra.mxu0 %v62
    %v88 = vpop.f32.mrf.mxu0
    %v89 = vadd.f32 %v56, %v88
    %90 = vdwg.mxu0
    %91 = vst [vmem:[#allocation5] sm:$0xff] %v86
    %92 = vst [vmem:[#allocation5 + $0x8] sm:$0xff] %v89
    // Predicated region
    $region18: #{tpu_custom_call.1} parent=1 // pred_check
      _
    $region19: #{tpu_custom_call.1} parent=1 // pred_check_branch
      %94 = sbr.rel (0) target = $region21
    $region20: #{tpu_custom_call.1} parent=1 // pred_region
      %96 = vsyncadd [#allocation4], 0
      %s97 = sshll.u32 [#allocation5], 4
      %s98 = int_to_ptr.vmem [resolvable:$true] %s97
      %s99 = sshll.u32 %s3, 4
      %s100 = int_to_ptr.hbm [resolvable:$true] %s99
      %105 = dma.vmem_to_hbm [thread:$0]  %s98, 256, %s100, [#allocation4], 128, 128, 8
    $region21: #{tpu_custom_call.1} parent=1 // pred_fallthru
      _
    // Predicated region
    $region22: #{tpu_custom_call.1} parent=1 // pred_check
      _
    $region23: #{tpu_custom_call.1} parent=1 // pred_check_branch
      %107 = sbr.rel (0) target = $region25
    $region24: #{tpu_custom_call.1} parent=1 // pred_region
      %109 = dma.done [#allocation4], 256
    $region25: #{tpu_custom_call.1} parent=1 // pred_fallthru
      _
    %110 = vsyncpa [#allocation3], 1
    %111 = vsyncpa [#allocation4], 1

</llo_original>
